<compile_context>
chip_gen: v6e
topology: v6e:2x2x1
jax: 0.10.0
libtpu: 0.0.40
codegen_flags: <defaults>
</compile_context>

<pallas_src>
import jax
import jax.numpy as jnp
from jax.experimental import pallas as pl
from jax.experimental.pallas import tpu as pltpu


MASK_DIM = 16                       # stand-in width for mask1/mask2/mask3


def _round_up(x, m):
    return ((x + m - 1) // m) * m


def _vmem_limit_bytes():
    """Generation-aware VMEM scoped limit (75% of physical, capped at 96 MiB)."""
    cap = None
    try:
        info = pltpu.get_tpu_info()
        cap = getattr(info, "vmem_capacity_bytes", None)
    except Exception:
        cap = None
    if not cap:
        cap = 64 * 1024 * 1024          # conservative fallback (v7x physical)
    return min(int(cap * 3 // 4), 96 * 1024 * 1024)


# ----------------------------------------------------------------------------
# dataprocess / datareset (layout glue, plain JAX)
# TODO(synk): folding this patch (un)shuffle into the ALD BlockSpecs needs a
# non-rectangular gather that index_map cannot express; kept as XLA transposes.
# ----------------------------------------------------------------------------
def dataprocess(x, grid):
    """(B, C, H, W) -> (B, K2, C*ph*pw) patch sequence."""
    B, C, H, W = x.shape
    gh, gw = grid
    ph, pw = H // gh, W // gw
    x = x.reshape(B, C, gh, ph, gw, pw)
    x = jnp.transpose(x, (0, 2, 4, 1, 3, 5))          # (B, gh, gw, C, ph, pw)
    return x.reshape(B, gh * gw, C * ph * pw)


def datareset(x_seq, H, W, grid):
    """Inverse of dataprocess: (B, K2, D) -> (B, C, H, W).  (Unused by the
    stand-in head, kept for fidelity with the original module.)"""
    B, K2, D = x_seq.shape
    gh, gw = grid
    ph, pw = H // gh, W // gw
    C = D // (ph * pw)
    x = x_seq.reshape(B, gh, gw, C, ph, pw)
    x = jnp.transpose(x, (0, 3, 1, 4, 2, 5))          # (B, C, gh, ph, gw, pw)
    return x.reshape(B, C, H, W)


# ----------------------------------------------------------------------------
# Pallas kernel 1a: ALD row softmax (exact division — perm is a model output)
# ----------------------------------------------------------------------------
def _ald_softmax_kernel(logits_ref, perm_ref):
    logits = logits_ref[...]                                   # (bb,K2,K2) f32
    m = jnp.max(logits, axis=-1, keepdims=True)
    e = jnp.exp(logits - m)
    denom = jnp.sum(e, axis=-1, keepdims=True)
    perm_ref[...] = e / denom                                  # exact softmax


# ----------------------------------------------------------------------------
# Pallas kernel 1b: ALD mix — block-diagonal packed matmul, tiled over (B, D)
#   bb samples per step are packed into one (bb*K2, bb*K2) block-diagonal LHS
#   so the MXU runs one big matmul instead of bb tiny ones (K2=16/64 underfills
#   the 256x256 MXU on v6e/v7x).  Extra zero-FLOPs are free: memory bound.
# ----------------------------------------------------------------------------
def _ald_mix_kernel(perm_ref, patches_ref, mixed_ref):
    p = perm_ref[...]                                          # (bb,K2,K2) f32
    bb, K2, _ = p.shape
    n = bb * K2
    p2 = p.reshape(n, K2)                                      # rows stacked
    p_tiled = jnp.tile(p2, (1, bb))                            # (n, n)
    row = jax.lax.broadcasted_iota(jnp.int32, (n, n), 0)
    col = jax.lax.broadcasted_iota(jnp.int32, (n, n), 1)
    p_bd = jnp.where((row // K2) == (col // K2), p_tiled, 0.0)  # block-diag
    x2 = patches_ref[...].reshape(n, -1)                       # (n, tD) bf16
    out = jnp.dot(p_bd.astype(jnp.bfloat16), x2,
                  preferred_element_type=jnp.float32)          # MXU, f32 acc
    mixed_ref[...] = out.reshape(bb, K2, -1).astype(mixed_ref.dtype)


def ald_layer(logits_sel, patches, *, vmem_limit):
    """logits_sel: (B, K2, K2) f32, patches: (B, K2, D)
       -> (mixed (B, K2, D) bf16, soft_perm (B, K2, K2) f32)."""
    B, K2, D = patches.shape
    Dpad = _round_up(D, 128)                       # lane-dense patch width
    bb = min(max(1, 256 // K2), B)                 # block-diag LHS ~256 wide
    Bpad = _round_up(B, bb)

    patches = patches.astype(jnp.bfloat16)         # halve HBM patch traffic
    pad_b, pad_d = Bpad - B, Dpad - D
    if pad_b or pad_d:
        patches = jnp.pad(patches, ((0, pad_b), (0, 0), (0, pad_d)))
    if pad_b:
        logits_sel = jnp.pad(logits_sel, ((0, pad_b), (0, 0), (0, 0)))

    # --- kernel 1a: soft permutation ---------------------------------------
    perm = pl.pallas_call(
        _ald_softmax_kernel,
        grid=(Bpad // bb,),
        in_specs=[pl.BlockSpec((bb, K2, K2), lambda i: (i, 0, 0))],
        out_specs=pl.BlockSpec((bb, K2, K2), lambda i: (i, 0, 0)),
        out_shape=jax.ShapeDtypeStruct((Bpad, K2, K2), jnp.float32),
        compiler_params=pltpu.CompilerParams(
            dimension_semantics=("parallel",),
            vmem_limit_bytes=vmem_limit),
    )(logits_sel)

    # --- kernel 1b: packed mix, tiled over (batch, D) ----------------------
    tD = Dpad
    for cand in (4096, 2048, 1024, 512, 256, 128):
        if Dpad % cand == 0:
            tD = cand
            break

    mixed = pl.pallas_call(
        _ald_mix_kernel,
        grid=(Bpad // bb, Dpad // tD),
        in_specs=[
            pl.BlockSpec((bb, K2, K2), lambda i, d: (i, 0, 0)),
            pl.BlockSpec((bb, K2, tD), lambda i, d: (i, 0, d)),
        ],
        out_specs=pl.BlockSpec((bb, K2, tD), lambda i, d: (i, 0, d)),
        out_shape=jax.ShapeDtypeStruct((Bpad, K2, Dpad), jnp.bfloat16),
        compiler_params=pltpu.CompilerParams(
            dimension_semantics=("parallel", "parallel"),
            vmem_limit_bytes=vmem_limit),
    )(perm, patches)

    return mixed[:B, :, :D], perm[:B]


# ----------------------------------------------------------------------------
# Pallas kernel 2: backbone head stand-in — tiled fused linear.
#   grid = (M_tiles, O_tiles, K_tiles); bf16 x / pre-tiled bf16 W; accumulate
#   directly into the k-invariant f32 output block (no VMEM accumulator
#   scratch); several row-streams per step share one weight read.
# ----------------------------------------------------------------------------
def _make_head_kernel(n_parts):
    def kernel(*refs):
        x_refs = refs[:n_parts]
        w_ref = refs[n_parts]
        o_refs = refs[n_parts + 1:]
        k = pl.program_id(2)

        @pl.when(k == 0)
        def _():
            for o in o_refs:
                o[...] = jnp.zeros_like(o)

        w = w_ref[...]                                        # (tk, tn) bf16
        for xr, o in zip(x_refs, o_refs):
            o[...] += jnp.dot(xr[...], w, preferred_element_type=jnp.float32)

    return kernel


def backbone_heads(flats, w_tiled, *, vmem_limit):
    """flats: list of (Ni, Fpad) bf16 row-streams, w_tiled: (Kt, Jt, tk, tn)
       bf16 pre-tiled weight.  Returns list of (Ni, Opad) f32 head outputs."""
    Kt, Jt, tk, tn = w_tiled.shape
    Opad = Jt * tn
    n_parts = len(flats)
    ns = [f.shape[0] for f in flats]

    # Common row padding / row tile (16-row multiple for bf16 sublane packing).
    mpad = _round_up(max(ns), 16)
    tm = mpad if mpad <= 128 else 128
    mpad = _round_up(mpad, tm)
    flats = [jnp.pad(f, ((0, mpad - f.shape[0]), (0, 0))) for f in flats]

    grid = (mpad // tm, Jt, Kt)
    in_specs = ([pl.BlockSpec((tm, tk), lambda i, j, k: (i, k))
                 for _ in range(n_parts)]
                + [pl.BlockSpec((None, None, tk, tn),
                                lambda i, j, k: (k, j, 0, 0))])
    out_specs = [pl.BlockSpec((tm, tn), lambda i, j, k: (i, j))
                 for _ in range(n_parts)]
    out_shape = [jax.ShapeDtypeStruct((mpad, Opad), jnp.float32)
                 for _ in range(n_parts)]

    outs = pl.pallas_call(
        _make_head_kernel(n_parts),
        grid=grid,
        in_specs=in_specs,
        out_specs=out_specs,
        out_shape=out_shape,
        compiler_params=pltpu.CompilerParams(
            dimension_semantics=("parallel", "parallel", "arbitrary"),
            vmem_limit_bytes=vmem_limit),
    )(*flats, w_tiled)
    if not isinstance(outs, (list, tuple)):
        outs = [outs]
    return [o[:n] for o, n in zip(outs, ns)]


# ----------------------------------------------------------------------------
# Model
# ----------------------------------------------------------------------------
class Only48ModelPallas:
    def __init__(self, num_classes, num_train, *, channels, height, width, key):
        self.num_classes = num_classes
        self.num_train = num_train
        self.C, self.H, self.W = channels, height, width
        self._vmem_limit = _vmem_limit_bytes()

        k1, k2, k3, k4 = jax.random.split(key, 4)
        # aldlayer(8, num_train): per-sample (64, 64) mixing logits
        self.ald8_logits = 0.1 * jax.random.normal(k1, (num_train, 64, 64),
                                                   dtype=jnp.float32)
        # aldlayer(4, num_train): per-sample (16, 16) mixing logits
        self.ald4_logits = 0.1 * jax.random.normal(k2, (num_train, 16, 16),
                                                   dtype=jnp.float32)

        # stand-in backbone head (see TODO at top): pre-tiled bf16 weights.
        self.feat = channels * height * width
        self.out_dim = 7 * num_classes + 3 * MASK_DIM
        self.fpad = _round_up(self.feat, 512)        # K-tileable feature width
        self.opad = _round_up(self.out_dim, 128)     # lane-dense output width
        # tn: keep >=2 j-tiles when Opad allows (megacore work on v7x)
        if self.opad >= 512:
            self.tn = 256
        elif self.opad >= 256:
            self.tn = 128
        else:
            self.tn = self.opad
        self.tk = next(t for t in (2048, 1024, 512) if self.fpad % t == 0)

        w = (jax.random.normal(k3, (self.fpad, self.opad), dtype=jnp.float32)
             / jnp.sqrt(jnp.float32(self.feat)))
        # tile-major layout: (Kt, Jt, tk, tn) -> contiguous ~MiB weight DMAs
        self.w_tiled = (w.reshape(self.fpad // self.tk, self.tk,
                                  self.opad // self.tn, self.tn)
                          .transpose(0, 2, 1, 3)
                          .astype(jnp.bfloat16))
        self.b_head = 0.01 * jax.random.normal(k4, (1, self.opad),
                                               dtype=jnp.float32)

    def forward(self, x, size, batch_seq, batchsize, train):
        result = None
        B = x.shape[0]
        vmem = self._vmem_limit

        if train and size in (8, 4):
            grid = [size, size]
            x_bf = x.astype(jnp.bfloat16)              # cast before transpose
            x_seq = dataprocess(x_bf, grid)            # (B, K2, D) bf16
            logits_bank = self.ald8_logits if size == 8 else self.ald4_logits
            logits_sel = logits_bank[batch_seq]        # (B, K2, K2)
            mixed, result = ald_layer(logits_sel, x_seq, vmem_limit=vmem)
            # TODO(synk): a real pmg_dcl backbone needs
            # datareset(mixed, H, W, grid) back to NCHW; the linear-head
            # stand-in consumes patch-flat order directly (its random weight
            # ordering is a free choice), saving two full-image HBM passes.
            parts = [x_seq.reshape(B, -1), mixed.reshape(B, -1)]
        else:
            parts = [x.reshape(B, -1).astype(jnp.bfloat16)]

        if parts[0].shape[1] != self.fpad:
            parts = [jnp.pad(p, ((0, 0), (0, self.fpad - p.shape[1])))
                     for p in parts]

        # stand-in pmg_dcl backbone: tiled Pallas linear head over all streams
        outs = backbone_heads(parts, self.w_tiled, vmem_limit=vmem)
        out = outs[0] if len(outs) == 1 else jnp.concatenate(outs, axis=0)
        out = out + self.b_head                        # XLA bias epilogue

        nc = self.num_classes
        xc1 = out[:, 0 * nc:1 * nc]
        xc2 = out[:, 1 * nc:2 * nc]
        xc3 = out[:, 2 * nc:3 * nc]
        x_concat = out[:, 3 * nc:4 * nc]
        xc1_swap = out[:, 4 * nc:5 * nc]
        xc2_swap = out[:, 5 * nc:6 * nc]
        xc3_swap = out[:, 6 * nc:7 * nc]
        m0 = 7 * nc
        mask1 = out[:, m0 + 0 * MASK_DIM:m0 + 1 * MASK_DIM]
        mask2 = out[:, m0 + 1 * MASK_DIM:m0 + 2 * MASK_DIM]
        mask3 = out[:, m0 + 2 * MASK_DIM:m0 + 3 * MASK_DIM]

        if size == 8 or size == 4:
            return (xc1, xc2, xc3, x_concat, xc1_swap, xc2_swap, xc3_swap,
                    mask1, mask2, mask3, result)
        else:
            return (xc1, xc2, xc3, x_concat, xc1_swap, xc2_swap, xc3_swap,
                    mask1, mask2, mask3)


# ----------------------------------------------------------------------------
if __name__ == "__main__":
    key = jax.random.PRNGKey(0)
    kx, kmodel = jax.random.split(key)

    # Small shapes consistent with the forward (original uses 448x448 RGB):
    B, C, H, W = 2, 4, 32, 32
    num_classes, num_train = 10, 8

    x = jax.random.normal(kx, (B, C, H, W), dtype=jnp.float32)
    batch_seq = jnp.array([0, 1], dtype=jnp.int32)

    model = Only48ModelPallas(num_classes, num_train,
                              channels=C, height=H, width=W, key=kmodel)

    outs = model.forward(x, size=8, batch_seq=batch_seq,
                         batchsize=B, train=True)
    jax.block_until_ready(outs)

    # sanity: 11-tuple in the train/size==8 branch, doubled batch on heads
    assert len(outs) == 11
    assert outs[0].shape == (2 * B, num_classes)      # xc1
    assert outs[10].shape == (B, 64, 64)              # result (soft perms)

    print("KERNEL_OK")
</pallas_src>

<mosaic_0001>
module attributes {stable_mosaic.version = 11 : i64} {
  func.func @_ald_softmax_kernel(%arg0: i32, %arg1: memref<2x64x64xf32, #tpu.memory_space<vmem>>, %arg2: memref<2x64x64xf32, #tpu.memory_space<vmem>>) attributes {dimension_semantics = [#tpu.dimension_semantics<parallel>], iteration_bounds = array<i64: 1>, scalar_prefetch = 0 : i64, scratch_operands = 0 : i64, tpu.core_type = #tpu.core_type<tc>, window_params = [{transform_indices = @transform_0, window_bounds = array<i64: 2, 64, 64>}, {transform_indices = @transform_1, window_bounds = array<i64: 2, 64, 64>}]} {
    %c0 = arith.constant 0 : index
    %c0_0 = arith.constant 0 : index
    %c0_1 = arith.constant 0 : index
    %0 = vector.load %arg1[%c0, %c0_0, %c0_1] : memref<2x64x64xf32, #tpu.memory_space<vmem>>, vector<2x64x64xf32>
    %cst = arith.constant dense<0xFF800000> : vector<2x64xf32>
    %1 = vector.multi_reduction <maximumf>, %0, %cst [2] : vector<2x64x64xf32> to vector<2x64xf32>
    %2 = vector.shape_cast %1 : vector<2x64xf32> to vector<2x64x1xf32>
    %3 = vector.broadcast %2 : vector<2x64x1xf32> to vector<2x64x64xf32>
    %4 = arith.subf %0, %3 : vector<2x64x64xf32>
    %5 = math.exp %4 : vector<2x64x64xf32>
    %cst_2 = arith.constant dense<0.000000e+00> : vector<2x64xf32>
    %6 = vector.multi_reduction <add>, %5, %cst_2 [2] : vector<2x64x64xf32> to vector<2x64xf32>
    %7 = vector.shape_cast %6 : vector<2x64xf32> to vector<2x64x1xf32>
    %8 = vector.broadcast %7 : vector<2x64x1xf32> to vector<2x64x64xf32>
    %9 = arith.divf %5, %8 : vector<2x64x64xf32>
    %c0_3 = arith.constant 0 : index
    %c0_4 = arith.constant 0 : index
    %c0_5 = arith.constant 0 : index
    %10 = vector.load %arg2[%c0_3, %c0_4, %c0_5] : memref<2x64x64xf32, #tpu.memory_space<vmem>>, vector<2x64x64xf32>
    tpu.vector_store %arg2[%c0_3, %c0_4, %c0_5], %9 {strides = array<i32>} : memref<2x64x64xf32, #tpu.memory_space<vmem>>, vector<2x64x64xf32>,
    return
  }
  func.func @transform_0(%arg0: i32) -> (i32, i32, i32) {
    %c0_i32 = arith.constant 0 : i32
    %c0_i32_0 = arith.constant 0 : i32
    %c0_i32_1 = arith.constant 0 : i32
    return %arg0, %c0_i32, %c0_i32_0 : i32, i32, i32
  }
  func.func @transform_1(%arg0: i32) -> (i32, i32, i32) {
    %c0_i32 = arith.constant 0 : i32
    %c0_i32_0 = arith.constant 0 : i32
    %c0_i32_1 = arith.constant 0 : i32
    return %arg0, %c0_i32, %c0_i32_0 : i32, i32, i32
  }
}

</mosaic_0001>

<llo_original>
// kernel: tpu_custom_call.1
$region0: #{tpu_custom_call.1}
  #allocation0 [shape = 'u32[]', space=smem, size = 0x4, offset = 0x4, fixed_abs, tag = 'smem constant byte address 0x4 - core index']
  #allocation1 [shape = 'u32[144,128]{1,0:T(1,128)}', space=vmem, size = 0x12000, scoped, tag = 'internal scratch']
  %s0 = inlined_call_operand.hbm [shape: f32[2,64,64], index: 0, kind: input, shape index: {}]
  %s1 = inlined_call_operand.hbm [shape: f32[2,64,64], index: 1, kind: output, shape index: {}]
  %s2 = sld [smem:[#allocation0]]
  $region18: #{tpu_custom_call.1} parent=0
    _
  %s4 = ssub.s32 1, %s2
  %s5 = scalar_select 0, %s4, %s2
  $region1: #{tpu_custom_call.1} parent=0
    #allocation2 [shape = 'u8[65536]{0}', space=vmem, size = 0x10000, scoped, tag = 'input window, operand 0, single buffered']
    #allocation3 [shape = 's32[1]{0}', space=sflag, size = 0x4, scoped, tag = 'scoped memory for tpu_custom_call.1']
    #allocation4 [shape = 's32[1]{0}', space=sflag, size = 0x4, scoped, tag = 'scoped memory for tpu_custom_call.1']
    #allocation5 [shape = 'u8[65536]{0}', space=vmem, size = 0x10000, scoped, tag = 'output window, operand 0, single buffered']
    %6 = vsyncpa [#allocation3], 0
    %7 = vsyncpa [#allocation4], 0
    // Predicated region
    $region2: #{tpu_custom_call.1} parent=1 // pred_check
      _
    $region3: #{tpu_custom_call.1} parent=1 // pred_check_branch
      %9 = sbr.rel (0) target = $region5
    $region4: #{tpu_custom_call.1} parent=1 // pred_region
      %s11 = ssub.s32 2048, 2048
      %12 = vsyncadd [#allocation3], %s11
      %s13 = sshll.u32 [#allocation2], 4
      %s14 = int_to_ptr.vmem [resolvable:$true] %s13
      %19 = dma.hbm_to_vmem [thread:$0]  %s0, 2048, %s14, [#allocation3], 128, 128, 8
    $region5: #{tpu_custom_call.1} parent=1 // pred_fallthru
      _
    // Predicated region
    $region6: #{tpu_custom_call.1} parent=1 // pred_check
      _
    $region7: #{tpu_custom_call.1} parent=1 // pred_check_branch
      %21 = sbr.rel (0) target = $region9
    $region8: #{tpu_custom_call.1} parent=1 // pred_region
      %22 = dma.done [#allocation3], 2048
    $region9: #{tpu_custom_call.1} parent=1 // pred_fallthru
      _
    %v23 = vld [vmem:[#allocation2] sm:$0xff]
    %v24 = vld [vmem:[#allocation2 + $0x8] sm:$0xff]
    %v25 = vld [vmem:[#allocation2 + $0x10] sm:$0xff]
    %v26 = vld [vmem:[#allocation2 + $0x18] sm:$0xff]
    %v27 = vld [vmem:[#allocation2 + $0x20] sm:$0xff]
    %v28 = vld [vmem:[#allocation2 + $0x28] sm:$0xff]
    %v29 = vld [vmem:[#allocation2 + $0x30] sm:$0xff]
    %v30 = vld [vmem:[#allocation2 + $0x38] sm:$0xff]
    %v31 = vld [vmem:[#allocation2 + $0x40] sm:$0xff]
    %v32 = vld [vmem:[#allocation2 + $0x48] sm:$0xff]
    %v33 = vld [vmem:[#allocation2 + $0x50] sm:$0xff]
    %v34 = vld [vmem:[#allocation2 + $0x58] sm:$0xff]
    %v35 = vld [vmem:[#allocation2 + $0x60] sm:$0xff]
    %v36 = vld [vmem:[#allocation2 + $0x68] sm:$0xff]
    %v37 = vld [vmem:[#allocation2 + $0x70] sm:$0xff]
    %v38 = vld [vmem:[#allocation2 + $0x78] sm:$0xff]
    %vm39 = vcmask 523264
    %v40 = vsel %vm39, %v23, -inf
    %41 = vmax.xlane.f32.xlu0 %v40
    %v42 = vpop.xlane.xlu0 %41
    %v43 = vsel %vm39, %v24, -inf
    %44 = vmax.xlane.f32.xlu0 %v43
    %v45 = vpop.xlane.xlu0 %44
    %v46 = vsel %vm39, %v25, -inf
    %47 = vmax.xlane.f32.xlu0 %v46
    %v48 = vpop.xlane.xlu0 %47
    %v49 = vsel %vm39, %v26, -inf
    %50 = vmax.xlane.f32.xlu0 %v49
    %v51 = vpop.xlane.xlu0 %50
    %v52 = vsel %vm39, %v27, -inf
    %53 = vmax.xlane.f32.xlu0 %v52
    %v54 = vpop.xlane.xlu0 %53
    %v55 = vsel %vm39, %v28, -inf
    %56 = vmax.xlane.f32.xlu0 %v55
    %v57 = vpop.xlane.xlu0 %56
    %v58 = vsel %vm39, %v29, -inf
    %59 = vmax.xlane.f32.xlu0 %v58
    %v60 = vpop.xlane.xlu0 %59
    %v61 = vsel %vm39, %v30, -inf
    %62 = vmax.xlane.f32.xlu0 %v61
    %v63 = vpop.xlane.xlu0 %62
    %v64 = vsel %vm39, %v31, -inf
    %65 = vmax.xlane.f32.xlu0 %v64
    %v66 = vpop.xlane.xlu0 %65
    %v67 = vsel %vm39, %v32, -inf
    %68 = vmax.xlane.f32.xlu0 %v67
    %v69 = vpop.xlane.xlu0 %68
    %v70 = vsel %vm39, %v33, -inf
    %71 = vmax.xlane.f32.xlu0 %v70
    %v72 = vpop.xlane.xlu0 %71
    %v73 = vsel %vm39, %v34, -inf
    %74 = vmax.xlane.f32.xlu0 %v73
    %v75 = vpop.xlane.xlu0 %74
    %v76 = vsel %vm39, %v35, -inf
    %77 = vmax.xlane.f32.xlu0 %v76
    %v78 = vpop.xlane.xlu0 %77
    %v79 = vsel %vm39, %v36, -inf
    %80 = vmax.xlane.f32.xlu0 %v79
    %v81 = vpop.xlane.xlu0 %80
    %v82 = vsel %vm39, %v37, -inf
    %83 = vmax.xlane.f32.xlu0 %v82
    %v84 = vpop.xlane.xlu0 %83
    %v85 = vsel %vm39, %v38, -inf
    %86 = vmax.xlane.f32.xlu0 %v85
    %v87 = vpop.xlane.xlu0 %86
    %v88 = vsub.f32 %v23, %v42
    %v89 = vsub.f32 %v24, %v45
    %v90 = vsub.f32 %v25, %v48
    %v91 = vsub.f32 %v26, %v51
    %v92 = vsub.f32 %v27, %v54
    %v93 = vsub.f32 %v28, %v57
    %v94 = vsub.f32 %v29, %v60
    %v95 = vsub.f32 %v30, %v63
    %v96 = vsub.f32 %v31, %v66
    %v97 = vsub.f32 %v32, %v69
    %v98 = vsub.f32 %v33, %v72
    %v99 = vsub.f32 %v34, %v75
    %v100 = vsub.f32 %v35, %v78
    %v101 = vsub.f32 %v36, %v81
    %v102 = vsub.f32 %v37, %v84
    %v103 = vsub.f32 %v38, %v87
    %v104 = vmul.f32 %v88, 1.442695
    %v105 = vpow.pop %v104
    %v106 = vmul.f32 %v89, 1.442695
    %v107 = vpow.pop %v106
    %v108 = vmul.f32 %v90, 1.442695
    %v109 = vpow.pop %v108
    %v110 = vmul.f32 %v91, 1.442695
    %v111 = vpow.pop %v110
    %v112 = vmul.f32 %v92, 1.442695
    %v113 = vpow.pop %v112
    %v114 = vmul.f32 %v93, 1.442695
    %v115 = vpow.pop %v114
    %v116 = vmul.f32 %v94, 1.442695
    %v117 = vpow.pop %v116
    %v118 = vmul.f32 %v95, 1.442695
    %v119 = vpow.pop %v118
    %v120 = vmul.f32 %v96, 1.442695
    %v121 = vpow.pop %v120
    %v122 = vmul.f32 %v97, 1.442695
    %v123 = vpow.pop %v122
    %v124 = vmul.f32 %v98, 1.442695
    %v125 = vpow.pop %v124
    %v126 = vmul.f32 %v99, 1.442695
    %v127 = vpow.pop %v126
    %v128 = vmul.f32 %v100, 1.442695
    %v129 = vpow.pop %v128
    %v130 = vmul.f32 %v101, 1.442695
    %v131 = vpow.pop %v130
    %v132 = vmul.f32 %v102, 1.442695
    %v133 = vpow.pop %v132
    %v134 = vmul.f32 %v103, 1.442695
    %v135 = vpow.pop %v134
    %v136 = vsel %vm39, %v105, 0.0
    %137 = vadd.xlane.f32.xlu0 %v136
    %v138 = vpop.xlane.xlu0 %137
    %v139 = vsel %vm39, %v107, 0.0
    %140 = vadd.xlane.f32.xlu0 %v139
    %v141 = vpop.xlane.xlu0 %140
    %v142 = vsel %vm39, %v109, 0.0
    %143 = vadd.xlane.f32.xlu0 %v142
    %v144 = vpop.xlane.xlu0 %143
    %v145 = vsel %vm39, %v111, 0.0
    %146 = vadd.xlane.f32.xlu0 %v145
    %v147 = vpop.xlane.xlu0 %146
    %v148 = vsel %vm39, %v113, 0.0
    %149 = vadd.xlane.f32.xlu0 %v148
    %v150 = vpop.xlane.xlu0 %149
    %v151 = vsel %vm39, %v115, 0.0
    %152 = vadd.xlane.f32.xlu0 %v151
    %v153 = vpop.xlane.xlu0 %152
    %v154 = vsel %vm39, %v117, 0.0
    %155 = vadd.xlane.f32.xlu0 %v154
    %v156 = vpop.xlane.xlu0 %155
    %v157 = vsel %vm39, %v119, 0.0
    %158 = vadd.xlane.f32.xlu0 %v157
    %v159 = vpop.xlane.xlu0 %158
    %v160 = vsel %vm39, %v121, 0.0
    %161 = vadd.xlane.f32.xlu0 %v160
    %v162 = vpop.xlane.xlu0 %161
    %v163 = vsel %vm39, %v123, 0.0
    %164 = vadd.xlane.f32.xlu0 %v163
    %v165 = vpop.xlane.xlu0 %164
    %v166 = vsel %vm39, %v125, 0.0
    %167 = vadd.xlane.f32.xlu0 %v166
    %v168 = vpop.xlane.xlu0 %167
    %v169 = vsel %vm39, %v127, 0.0
    %170 = vadd.xlane.f32.xlu0 %v169
    %v171 = vpop.xlane.xlu0 %170
    %v172 = vsel %vm39, %v129, 0.0
    %173 = vadd.xlane.f32.xlu0 %v172
    %v174 = vpop.xlane.xlu0 %173
    %v175 = vsel %vm39, %v131, 0.0
    %176 = vadd.xlane.f32.xlu0 %v175
    %v177 = vpop.xlane.xlu0 %176
    %v178 = vsel %vm39, %v133, 0.0
    %179 = vadd.xlane.f32.xlu0 %v178
    %v180 = vpop.xlane.xlu0 %179
    %v181 = vsel %vm39, %v135, 0.0
    %182 = vadd.xlane.f32.xlu0 %v181
    %v183 = vpop.xlane.xlu0 %182
    %v184 = vrcp.pop %v138
    %v185 = vmul.f32 %v105, %v184
    %v186 = vrcp.pop %v141
    %v187 = vmul.f32 %v107, %v186
    %v188 = vrcp.pop %v144
    %v189 = vmul.f32 %v109, %v188
    %v190 = vrcp.pop %v147
    %v191 = vmul.f32 %v111, %v190
    %v192 = vrcp.pop %v150
    %v193 = vmul.f32 %v113, %v192
    %v194 = vrcp.pop %v153
    %v195 = vmul.f32 %v115, %v194
    %v196 = vrcp.pop %v156
    %v197 = vmul.f32 %v117, %v196
    %v198 = vrcp.pop %v159
    %v199 = vmul.f32 %v119, %v198
    %v200 = vrcp.pop %v162
    %v201 = vmul.f32 %v121, %v200
    %v202 = vrcp.pop %v165
    %v203 = vmul.f32 %v123, %v202
    %v204 = vrcp.pop %v168
    %v205 = vmul.f32 %v125, %v204
    %v206 = vrcp.pop %v171
    %v207 = vmul.f32 %v127, %v206
    %v208 = vrcp.pop %v174
    %v209 = vmul.f32 %v129, %v208
    %v210 = vrcp.pop %v177
    %v211 = vmul.f32 %v131, %v210
    %v212 = vrcp.pop %v180
    %v213 = vmul.f32 %v133, %v212
    %v214 = vrcp.pop %v183
    %v215 = vmul.f32 %v135, %v214
    %216 = vst.msk [vmem:[#allocation5] sm:$0xff] %vm39, %v185
    %217 = vst.msk [vmem:[#allocation5 + $0x8] sm:$0xff] %vm39, %v187
    %218 = vst.msk [vmem:[#allocation5 + $0x10] sm:$0xff] %vm39, %v189
    %219 = vst.msk [vmem:[#allocation5 + $0x18] sm:$0xff] %vm39, %v191
    %220 = vst.msk [vmem:[#allocation5 + $0x20] sm:$0xff] %vm39, %v193
    %221 = vst.msk [vmem:[#allocation5 + $0x28] sm:$0xff] %vm39, %v195
    %222 = vst.msk [vmem:[#allocation5 + $0x30] sm:$0xff] %vm39, %v197
    %223 = vst.msk [vmem:[#allocation5 + $0x38] sm:$0xff] %vm39, %v199
    %224 = vst.msk [vmem:[#allocation5 + $0x40] sm:$0xff] %vm39, %v201
    %225 = vst.msk [vmem:[#allocation5 + $0x48] sm:$0xff] %vm39, %v203
    %226 = vst.msk [vmem:[#allocation5 + $0x50] sm:$0xff] %vm39, %v205
    %227 = vst.msk [vmem:[#allocation5 + $0x58] sm:$0xff] %vm39, %v207
    %228 = vst.msk [vmem:[#allocation5 + $0x60] sm:$0xff] %vm39, %v209
    %229 = vst.msk [vmem:[#allocation5 + $0x68] sm:$0xff] %vm39, %v211
    %230 = vst.msk [vmem:[#allocation5 + $0x70] sm:$0xff] %vm39, %v213
    %231 = vst.msk [vmem:[#allocation5 + $0x78] sm:$0xff] %vm39, %v215
    // Predicated region
    $region10: #{tpu_custom_call.1} parent=1 // pred_check
      _
    $region11: #{tpu_custom_call.1} parent=1 // pred_check_branch
      %233 = sbr.rel (0) target = $region13
    $region12: #{tpu_custom_call.1} parent=1 // pred_region
      %s235 = ssub.s32 2048, 2048
      %236 = vsyncadd [#allocation4], %s235
      %s237 = sshll.u32 [#allocation5], 4
      %s238 = int_to_ptr.vmem [resolvable:$true] %s237
      %243 = dma.vmem_to_hbm [thread:$0]  %s238, 2048, %s1, [#allocation4], 128, 128, 8
    $region13: #{tpu_custom_call.1} parent=1 // pred_fallthru
      _
    // Predicated region
    $region14: #{tpu_custom_call.1} parent=1 // pred_check
      _
    $region15: #{tpu_custom_call.1} parent=1 // pred_check_branch
      %245 = sbr.rel (0) target = $region17
    $region16: #{tpu_custom_call.1} parent=1 // pred_region
      %246 = dma.done [#allocation4], 2048
    $region17: #{tpu_custom_call.1} parent=1 // pred_fallthru
      _
    %247 = vsyncpa [#allocation3], 1
    %248 = vsyncpa [#allocation4], 1

</llo_original>
